<compile_context>
chip_gen: v6e
topology: v6e:2x2x1
jax: 0.10.0
libtpu: 0.0.40
codegen_flags: <defaults>
</compile_context>

<pallas_src>
import jax
import jax.numpy as jnp
from jax.experimental import pallas as pl
from jax.experimental.pallas import tpu as pltpu


def _round_up(n, m):
    return ((n + m - 1) // m) * m


# --------------------------------------------------------------------------
# Kernel 1: W1 fully VMEM-resident, single fc1 pass (no K grid axis).
# --------------------------------------------------------------------------
def _classifier_resident_kernel(x_ref, w1_ref, b1_ref, w2_ref, b2_ref, out_ref):
    h = jnp.dot(x_ref[...], w1_ref[...], preferred_element_type=jnp.float32)
    h = jnp.tanh(h + b1_ref[...])              # f32 bias-add + tanh (EUP)
    # dropout: identity (eval / inference mode)
    o = jnp.dot(h.astype(w2_ref.dtype), w2_ref[...],
                preferred_element_type=jnp.float32)
    out_ref[...] = (o + b2_ref[...]).astype(out_ref.dtype)


# --------------------------------------------------------------------------
# Kernel 2: fc1 contraction (K) tiled — for D too large to keep W1 resident.
# --------------------------------------------------------------------------
def _classifier_ktiled_kernel(x_ref, w1_ref, b1_ref, w2_ref, b2_ref, out_ref,
                              acc_ref):
    k = pl.program_id(1)
    part = jnp.dot(x_ref[...], w1_ref[...], preferred_element_type=jnp.float32)

    @pl.when(k == 0)
    def _assign():          # assign on first K step: no zero-init store + RMW
        acc_ref[...] = part

    @pl.when(k != 0)
    def _accumulate():
        acc_ref[...] += part

    @pl.when(k == pl.num_programs(1) - 1)
    def _finalize():
        # In-place tanh: avoid materializing a second (TM, D) temp.
        acc_ref[...] = jnp.tanh(acc_ref[...] + b1_ref[...])
        # dropout: identity (eval / inference mode)
        o = jnp.dot(acc_ref[...].astype(w2_ref.dtype), w2_ref[...],
                    preferred_element_type=jnp.float32)
        out_ref[...] = (o + b2_ref[...]).astype(out_ref.dtype)


# --------------------------------------------------------------------------
# Wrapper
# --------------------------------------------------------------------------
def transformer_classifier(x, w1, b1, w2, b2, *, tm=256, tk=256,
                           compute_dtype=jnp.bfloat16,
                           max_resident_w1_bytes=8 * 2**20):
    """x: [B, D], w1: [D, D], b1: [D], w2: [D, C], b2: [C] -> [B, C].

    compute_dtype: dtype fed to the MXU (default bf16 — native on v5e/v6e/v7x);
    accumulation, bias-add and tanh remain f32.  Pass None to keep input dtype.
    """
    B, D = x.shape
    C = w2.shape[1]
    out_dtype = x.dtype
    hp = jax.lax.Precision.HIGHEST

    # --- tiny / sub-tile shapes: let XLA fuse it, a custom call is overhead.
    if B < 16 or D < 128:
        h = jnp.tanh(jnp.dot(x, w1, precision=hp) + b1)
        return (jnp.dot(h, w2, precision=hp) + b2).astype(out_dtype)

    if compute_dtype is not None:
        x = x.astype(compute_dtype)
        w1 = w1.astype(compute_dtype)
        w2 = w2.astype(compute_dtype)
    cbytes = jnp.dtype(x.dtype).itemsize
    out_bytes = jnp.dtype(out_dtype).itemsize

    # --- pad output feature dim to a multiple of 128 lanes (lane-dense stores,
    #     full MXU output columns for fc2); sliced back after the call.
    C_pad = _round_up(C, 128)
    if C_pad != C:
        w2 = jnp.pad(w2, ((0, 0), (0, C_pad - C)))
        b2 = jnp.pad(b2, (0, C_pad - C))

    # --- adaptive batch tiling: balanced tiles, 8-aligned (avoids e.g. 270->512
    #     padding; >=2 tiles for B > tm so both v7x TCs get work).
    n_tiles = -(-B // tm)
    TM = _round_up(-(-B // n_tiles), 8)
    B_pad = _round_up(B, TM)
    if B_pad != B:
        x = jnp.pad(x, ((0, B_pad - B), (0, 0)))

    b1_2d = b1.reshape(1, D).astype(jnp.float32)
    b2_2d = b2.reshape(1, C_pad).astype(jnp.float32)

    w1_resident = (D * D * cbytes) <= max_resident_w1_bytes

    # --- rough per-iteration VMEM footprint -> scoped limit (raises v5e's
    #     16 MiB default, capped below v7x's 64 MiB physical VMEM).
    est = 2 * D * C_pad * cbytes + 2 * TM * C_pad * (4 + out_bytes) \
        + 2 * (D + C_pad) * 4
    if w1_resident:
        est += 2 * TM * D * cbytes + 2 * D * D * cbytes + 2 * TM * D * 4
    else:
        TK = max(128, (min(tk, _round_up(D, 128)) // 128) * 128)
        est += 2 * TM * TK * cbytes + 2 * TK * D * cbytes + 2 * TM * D * 4
    vmem_limit = int(min(max(est * 13 // 10, 32 * 2**20), 64 * 2**20))

    if w1_resident:
        grid = (B_pad // TM,)
        out_padded = pl.pallas_call(
            _classifier_resident_kernel,
            out_shape=jax.ShapeDtypeStruct((B_pad, C_pad), out_dtype),
            grid_spec=pltpu.PrefetchScalarGridSpec(
                num_scalar_prefetch=0,
                grid=grid,
                in_specs=[
                    pl.BlockSpec((TM, D), lambda i: (i, 0)),       # x tile
                    pl.BlockSpec((D, D), lambda i: (0, 0)),        # W1 resident
                    pl.BlockSpec((1, D), lambda i: (0, 0)),        # b1 resident
                    pl.BlockSpec((D, C_pad), lambda i: (0, 0)),    # W2 resident
                    pl.BlockSpec((1, C_pad), lambda i: (0, 0)),    # b2 resident
                ],
                out_specs=pl.BlockSpec((TM, C_pad), lambda i: (i, 0)),
            ),
            compiler_params=pltpu.CompilerParams(
                dimension_semantics=("parallel",),
                vmem_limit_bytes=vmem_limit),
        )(x, w1, b1_2d, w2, b2_2d)
    else:
        # --- fc1 contraction (K) tiling for large D; zero-padding the K dim of
        #     x / rows of W1 contributes nothing to the accumulation.
        K_pad = _round_up(D, TK)
        if K_pad != D:
            x = jnp.pad(x, ((0, 0), (0, K_pad - D)))
            w1 = jnp.pad(w1, ((0, K_pad - D), (0, 0)))
        grid = (B_pad // TM, K_pad // TK)
        out_padded = pl.pallas_call(
            _classifier_ktiled_kernel,
            out_shape=jax.ShapeDtypeStruct((B_pad, C_pad), out_dtype),
            grid_spec=pltpu.PrefetchScalarGridSpec(
                num_scalar_prefetch=0,
                grid=grid,
                in_specs=[
                    pl.BlockSpec((TM, TK), lambda i, k: (i, k)),     # x tile
                    pl.BlockSpec((TK, D), lambda i, k: (k, 0)),      # W1 K-slab
                    pl.BlockSpec((1, D), lambda i, k: (0, 0)),       # b1 resident
                    pl.BlockSpec((D, C_pad), lambda i, k: (0, 0)),   # W2 resident
                    pl.BlockSpec((1, C_pad), lambda i, k: (0, 0)),   # b2 resident
                ],
                out_specs=pl.BlockSpec((TM, C_pad), lambda i, k: (i, 0)),
                scratch_shapes=[pltpu.VMEM((TM, D), jnp.float32)],   # fc1 acc
            ),
            compiler_params=pltpu.CompilerParams(
                dimension_semantics=("parallel", "arbitrary"),
                vmem_limit_bytes=vmem_limit),
        )(x, w1, b1_2d, w2, b2_2d)

    return out_padded[:B, :C]


def reference(x, w1, b1, w2, b2):
    hp = jax.lax.Precision.HIGHEST
    h = jnp.tanh(jnp.dot(x, w1, precision=hp) + b1)
    return jnp.dot(h, w2, precision=hp) + b2


def _make_inputs(key, B, D, C):
    kx, kw1, kb1, kw2, kb2 = jax.random.split(key, 5)
    x = jax.random.normal(kx, (B, D), dtype=jnp.float32)
    # Deterministic parameter init (scaled like PyTorch Linear's uniform bound).
    w1 = jax.random.uniform(kw1, (D, D), jnp.float32, -1.0, 1.0) / jnp.sqrt(D)
    b1 = jax.random.uniform(kb1, (D,), jnp.float32, -1.0, 1.0) / jnp.sqrt(D)
    w2 = jax.random.uniform(kw2, (D, C), jnp.float32, -1.0, 1.0) / jnp.sqrt(D)
    b2 = jax.random.uniform(kb2, (C,), jnp.float32, -1.0, 1.0) / jnp.sqrt(D)
    return x, w1, b1, w2, b2


if __name__ == "__main__":
    key = jax.random.PRNGKey(0)
    k_small, k_mid, k_big = jax.random.split(key, 3)

    # 1) Small shapes consistent with the module (batch=8, d_model=32,
    #    num_class=4) -> XLA fallback path (sub-tile shapes).
    B, D, C = 8, 32, 4
    x, w1, b1, w2, b2 = _make_inputs(k_small, B, D, C)
    out = transformer_classifier(x, w1, b1, w2, b2)
    jax.block_until_ready(out)
    ref = reference(x, w1, b1, w2, b2)
    assert out.shape == (B, C)
    assert jnp.allclose(out, ref, atol=1e-5, rtol=1e-5)

    # 2) Resident-W1 Pallas path: batch/ lane padding + adaptive TM (270 -> 2x136).
    B2, D2, C2 = 270, 256, 10
    x2, w12, b12, w22, b22 = _make_inputs(k_mid, B2, D2, C2)
    # f32 compute: tight check of kernel structure.
    out2_f32 = transformer_classifier(x2, w12, b12, w22, b22,
                                      compute_dtype=None)
    jax.block_until_ready(out2_f32)
    ref2 = reference(x2, w12, b12, w22, b22)
    assert out2_f32.shape == (B2, C2)
    assert jnp.allclose(out2_f32, ref2, atol=1e-3, rtol=1e-3)
    # default bf16 compute (f32 accumulation): looser tolerance.
    out2_bf16 = transformer_classifier(x2, w12, b12, w22, b22)
    jax.block_until_ready(out2_bf16)
    assert jnp.allclose(out2_bf16, ref2, atol=5e-2, rtol=5e-2)

    # 3) K-tiled Pallas path (forced), exercises assign/accumulate + finalize.
    B3, D3, C3 = 136, 512, 10
    x3, w13, b13, w23, b23 = _make_inputs(k_big, B3, D3, C3)
    out3 = transformer_classifier(x3, w13, b13, w23, b23,
                                  max_resident_w1_bytes=0, tk=256)
    jax.block_until_ready(out3)
    ref3 = reference(x3, w13, b13, w23, b23)
    assert out3.shape == (B3, C3)
    assert jnp.allclose(out3, ref3, atol=5e-2, rtol=5e-2)

    print("KERNEL_OK")
</pallas_src>

<mosaic_0001>
module attributes {stable_mosaic.version = 11 : i64} {
  func.func @_classifier_resident_kernel(%arg0: i32, %arg1: memref<136x256xf32, #tpu.memory_space<vmem>>, %arg2: memref<256x256xf32, #tpu.memory_space<vmem>>, %arg3: memref<1x256xf32, #tpu.memory_space<vmem>>, %arg4: memref<256x128xf32, #tpu.memory_space<vmem>>, %arg5: memref<1x128xf32, #tpu.memory_space<vmem>>, %arg6: memref<136x128xf32, #tpu.memory_space<vmem>>) attributes {dimension_semantics = [#tpu.dimension_semantics<parallel>], iteration_bounds = array<i64: 2>, scalar_prefetch = 0 : i64, scratch_operands = 0 : i64, tpu.core_type = #tpu.core_type<tc>, window_params = [{transform_indices = @transform_0, window_bounds = array<i64: 136, 256>}, {pipeline_mode = #tpu.pipeline_mode<synchronous>, transform_indices = @transform_1, window_bounds = array<i64: 256, 256>}, {pipeline_mode = #tpu.pipeline_mode<synchronous>, transform_indices = @transform_2, window_bounds = array<i64: 1, 256>}, {pipeline_mode = #tpu.pipeline_mode<synchronous>, transform_indices = @transform_3, window_bounds = array<i64: 256, 128>}, {pipeline_mode = #tpu.pipeline_mode<synchronous>, transform_indices = @transform_4, window_bounds = array<i64: 1, 128>}, {transform_indices = @transform_5, window_bounds = array<i64: 136, 128>}]} {
    %c0 = arith.constant 0 : index
    %c0_0 = arith.constant 0 : index
    %0 = vector.load %arg1[%c0, %c0_0] : memref<136x256xf32, #tpu.memory_space<vmem>>, vector<136x256xf32>
    %c0_1 = arith.constant 0 : index
    %c0_2 = arith.constant 0 : index
    %1 = vector.load %arg2[%c0_1, %c0_2] : memref<256x256xf32, #tpu.memory_space<vmem>>, vector<256x256xf32>
    %cst = arith.constant dense<0.000000e+00> : vector<136x256xf32>
    %2 = tpu.matmul %0, %1, %cst {dimension_numbers = #tpu.dot_dimension_numbers<[1], [0], [0], [1], [0, 0, 1, 1], [], []>} : vector<136x256xf32>, vector<256x256xf32>, vector<136x256xf32> -> vector<136x256xf32>
    %c0_3 = arith.constant 0 : index
    %c0_4 = arith.constant 0 : index
    %3 = vector.load %arg3[%c0_3, %c0_4] : memref<1x256xf32, #tpu.memory_space<vmem>>, vector<1x256xf32>
    %4 = vector.broadcast %3 : vector<1x256xf32> to vector<136x256xf32>
    %5 = arith.addf %2, %4 : vector<136x256xf32>
    %6 = math.tanh %5 : vector<136x256xf32>
    %c0_5 = arith.constant 0 : index
    %c0_6 = arith.constant 0 : index
    %7 = vector.load %arg4[%c0_5, %c0_6] : memref<256x128xf32, #tpu.memory_space<vmem>>, vector<256x128xf32>
    %cst_7 = arith.constant dense<0.000000e+00> : vector<136x128xf32>
    %8 = tpu.matmul %6, %7, %cst_7 {dimension_numbers = #tpu.dot_dimension_numbers<[1], [0], [0], [1], [0, 0, 1, 1], [], []>} : vector<136x256xf32>, vector<256x128xf32>, vector<136x128xf32> -> vector<136x128xf32>
    %c0_8 = arith.constant 0 : index
    %c0_9 = arith.constant 0 : index
    %9 = vector.load %arg5[%c0_8, %c0_9] : memref<1x128xf32, #tpu.memory_space<vmem>>, vector<1x128xf32>
    %10 = vector.broadcast %9 : vector<1x128xf32> to vector<136x128xf32>
    %11 = arith.addf %8, %10 : vector<136x128xf32>
    %c0_10 = arith.constant 0 : index
    %c0_11 = arith.constant 0 : index
    %12 = vector.load %arg6[%c0_10, %c0_11] : memref<136x128xf32, #tpu.memory_space<vmem>>, vector<136x128xf32>
    tpu.vector_store %arg6[%c0_10, %c0_11], %11 {strides = array<i32>} : memref<136x128xf32, #tpu.memory_space<vmem>>, vector<136x128xf32>,
    return
  }
  func.func @transform_0(%arg0: i32) -> (i32, i32) {
    %c0_i32 = arith.constant 0 : i32
    %c0_i32_0 = arith.constant 0 : i32
    return %arg0, %c0_i32 : i32, i32
  }
  func.func @transform_1(%arg0: i32) -> (i32, i32) {
    %c0_i32 = arith.constant 0 : i32
    %c0_i32_0 = arith.constant 0 : i32
    %c0_i32_1 = arith.constant 0 : i32
    return %c0_i32, %c0_i32_0 : i32, i32
  }
  func.func @transform_2(%arg0: i32) -> (i32, i32) {
    %c0_i32 = arith.constant 0 : i32
    %c0_i32_0 = arith.constant 0 : i32
    %c0_i32_1 = arith.constant 0 : i32
    return %c0_i32, %c0_i32_0 : i32, i32
  }
  func.func @transform_3(%arg0: i32) -> (i32, i32) {
    %c0_i32 = arith.constant 0 : i32
    %c0_i32_0 = arith.constant 0 : i32
    %c0_i32_1 = arith.constant 0 : i32
    return %c0_i32, %c0_i32_0 : i32, i32
  }
  func.func @transform_4(%arg0: i32) -> (i32, i32) {
    %c0_i32 = arith.constant 0 : i32
    %c0_i32_0 = arith.constant 0 : i32
    %c0_i32_1 = arith.constant 0 : i32
    return %c0_i32, %c0_i32_0 : i32, i32
  }
  func.func @transform_5(%arg0: i32) -> (i32, i32) {
    %c0_i32 = arith.constant 0 : i32
    %c0_i32_0 = arith.constant 0 : i32
    return %arg0, %c0_i32 : i32, i32
  }
}

</mosaic_0001>

<llo_original>
// kernel: tpu_custom_call.1
$region0: #{tpu_custom_call.1}
  #allocation0 [shape = 'u32[]', space=smem, size = 0x4, offset = 0x4, fixed_abs, tag = 'smem constant byte address 0x4 - core index']
  #allocation1 [shape = 'u32[144,128]{1,0:T(1,128)}', space=vmem, size = 0x12000, scoped, tag = 'internal scratch']
  %s0 = inlined_call_operand.hbm [shape: f32[272,256], index: 0, kind: input, shape index: {}]
  %s1 = inlined_call_operand.hbm [shape: f32[256,256], index: 1, kind: input, shape index: {}]
  %s2 = inlined_call_operand.vmem [shape: f32[1,256], index: 2, kind: input, shape index: {}]
  %s3 = inlined_call_operand.hbm [shape: f32[256,128], index: 3, kind: input, shape index: {}]
  %s4 = inlined_call_operand.vmem [shape: f32[1,128], index: 4, kind: input, shape index: {}]
  %s5 = inlined_call_operand.hbm [shape: f32[272,128], index: 5, kind: output, shape index: {}]
  %s6 = sld [smem:[#allocation0]]
  $region65: #{tpu_custom_call.1} parent=0
    _
  %s8 = ssub.s32 1, %s6
  %s9 = scalar_select 0, %s8, %s6
  $region1: #{tpu_custom_call.1} parent=0
    #allocation2 [shape = 'u8[278528]{0}', space=vmem, size = 0x44000, scoped, tag = 'input window, operand 0']
    #allocation3 [shape = 's32[2]{0}', space=sflag, size = 0x8, scoped, tag = 'scoped memory for tpu_custom_call.1']
    #allocation4 [shape = 's32[2]{0}', space=sflag, size = 0x8, scoped, tag = 'scoped memory for tpu_custom_call.1']
    #allocation5 [shape = 'u8[262144]{0}', space=vmem, size = 0x40000, scoped, tag = 'input window, operand 1, single buffered']
    #allocation6 [shape = 's32[1]{0}', space=sflag, size = 0x4, scoped, tag = 'scoped memory for tpu_custom_call.1']
    #allocation7 [shape = 'u8[131072]{0}', space=vmem, size = 0x20000, scoped, tag = 'input window, operand 3, single buffered']
    #allocation8 [shape = 'u8[139264]{0}', space=vmem, size = 0x22000, scoped, tag = 'output window, operand 0']
    %10 = vsyncpa [#allocation3], 0
    %s11 = scalar_lea.sflag [#allocation3], 1
    %12 = vsyncpa %s11, 0
    %13 = vsyncpa [#allocation6], 0
    %14 = vsyncpa [#allocation4], 0
    %s15 = scalar_lea.sflag [#allocation4], 1
    %16 = vsyncpa %s15, 0
    loop: start=0, step=1, limit=4
    $region2: #{tpu_custom_call.1} parent=1 // loop_pre_header
      _
    $region3: #{tpu_custom_call.1} parent=1 // loop_header
      %s18 = sphi 0, %s22
      %p19 = scmp.ge.s32.totalorder %s18, 4
      %s28 = sphi 0, %s30
      %s31 = sphi 0, %s28
      %s32 = sphi 0, %s31
      %s48 = sphi 0, %s32
      %s52 = sphi 0, %s52
      %s54 = sphi 0, %s52
      %s55 = sphi 0, %s54
      %s69 = sphi 0, %s55
      %s73 = sphi 0, %s73
      %s75 = sphi 0, %s73
      %s76 = sphi 0, %s75
      %s90 = sphi 0, %s76
      %s94 = sphi 0, %s94
      %s96 = sphi 0, %s94
      %s97 = sphi 0, %s96
      %s111 = sphi 0, %s97
      %s115 = sphi 0, %s115
      %s117 = sphi 0, %s115
      %s118 = sphi 0, %s117
      %s132 = sphi 0, %s118
      %s138 = sphi 0, %s140
      %s141 = sphi 0, %s138
      %s142 = sphi 0, %s141
      %s158 = sphi 0, %s142
    $region4: #{tpu_custom_call.1} parent=1 // loop_header_branch
      %21 = sbr.rel (%p19) target = $region8
    $region5: #{tpu_custom_call.1} parent=1 // loop_body
      %s23 = ssub.s32 %s18, 1
      %s24 = ssub.s32 %s18, 2
      %s25 = sadd.s32 %s18, 1
      %s26 = ssub.s32 %s18, %s25
      %p27 = scmp.eq.s32.totalorder %s26, 0
      %s29 = sadd.s32 %s28, 1
      %s30 = scalar_select %p27, %s28, %s29
      %p33 = pneg %p27
      %p34 = scmp.eq.s32.totalorder %s18, 1
      %p35 = por %p33, %p34
      %p36 = scmp.ne.s32.totalorder %s28, %s31
      %p37 = scmp.eq.s32.totalorder %s18, 0
      %p38 = por %p36, %p37
      %p39 = scmp.ne.s32.totalorder %s28, %s31
      %p40 = scmp.eq.s32.totalorder %s23, 1
      %p41 = por %p39, %p40
      %p42 = scmp.ne.s32.totalorder %s31, %s32
      %p43 = scmp.eq.s32.totalorder %s23, 0
      %p44 = por %p42, %p43
      %p45 = scmp.ne.s32.totalorder %s31, %s32
      %p46 = scmp.eq.s32.totalorder %s24, 1
      %p47 = por %p45, %p46
      %p49 = scmp.ne.s32.totalorder %s32, %s48
      %p50 = scmp.eq.s32.totalorder %s24, 0
      %p51 = por %p49, %p50
      %s53 = sadd.s32 %s52, 1
      %p56 = scmp.eq.s32.totalorder %s18, 1
      %p57 = scmp.ne.s32.totalorder %s52, %s54
      %p58 = scmp.eq.s32.totalorder %s18, 0
      %p59 = por %p57, %p58
      %p60 = scmp.ne.s32.totalorder %s52, %s54
      %p61 = scmp.eq.s32.totalorder %s23, 1
      %p62 = por %p60, %p61
      %p63 = scmp.ne.s32.totalorder %s54, %s55
      %p64 = scmp.eq.s32.totalorder %s23, 0
      %p65 = por %p63, %p64
      %p66 = scmp.ne.s32.totalorder %s54, %s55
      %p67 = scmp.eq.s32.totalorder %s24, 1
      %p68 = por %p66, %p67
      %p70 = scmp.ne.s32.totalorder %s55, %s69
      %p71 = scmp.eq.s32.totalorder %s24, 0
      %p72 = por %p70, %p71
      %s74 = sadd.s32 %s73, 1
      %p77 = scmp.eq.s32.totalorder %s18, 1
      %p78 = scmp.ne.s32.totalorder %s73, %s75
      %p79 = scmp.eq.s32.totalorder %s18, 0
      %p80 = por %p78, %p79
      %p81 = scmp.ne.s32.totalorder %s73, %s75
      %p82 = scmp.eq.s32.totalorder %s23, 1
      %p83 = por %p81, %p82
      %p84 = scmp.ne.s32.totalorder %s75, %s76
      %p85 = scmp.eq.s32.totalorder %s23, 0
      %p86 = por %p84, %p85
      %p87 = scmp.ne.s32.totalorder %s75, %s76
      %p88 = scmp.eq.s32.totalorder %s24, 1
      %p89 = por %p87, %p88
      %p91 = scmp.ne.s32.totalorder %s76, %s90
      %p92 = scmp.eq.s32.totalorder %s24, 0
      %p93 = por %p91, %p92
      %s95 = sadd.s32 %s94, 1
      %p98 = scmp.eq.s32.totalorder %s18, 1
      %p99 = scmp.ne.s32.totalorder %s94, %s96
      %p100 = scmp.eq.s32.totalorder %s18, 0
      %p101 = por %p99, %p100
      %p102 = scmp.ne.s32.totalorder %s94, %s96
      %p103 = scmp.eq.s32.totalorder %s23, 1
      %p104 = por %p102, %p103
      %p105 = scmp.ne.s32.totalorder %s96, %s97
      %p106 = scmp.eq.s32.totalorder %s23, 0
      %p107 = por %p105, %p106
      %p108 = scmp.ne.s32.totalorder %s96, %s97
      %p109 = scmp.eq.s32.totalorder %s24, 1
      %p110 = por %p108, %p109
      %p112 = scmp.ne.s32.totalorder %s97, %s111
      %p113 = scmp.eq.s32.totalorder %s24, 0
      %p114 = por %p112, %p113
      %s116 = sadd.s32 %s115, 1
      %p119 = scmp.eq.s32.totalorder %s18, 1
      %p120 = scmp.ne.s32.totalorder %s115, %s117
      %p121 = scmp.eq.s32.totalorder %s18, 0
      %p122 = por %p120, %p121
      %p123 = scmp.ne.s32.totalorder %s115, %s117
      %p124 = scmp.eq.s32.totalorder %s23, 1
      %p125 = por %p123, %p124
      %p126 = scmp.ne.s32.totalorder %s117, %s118
      %p127 = scmp.eq.s32.totalorder %s23, 0
      %p128 = por %p126, %p127
      %p129 = scmp.ne.s32.totalorder %s117, %s118
      %p130 = scmp.eq.s32.totalorder %s24, 1
      %p131 = por %p129, %p130
      %p133 = scmp.ne.s32.totalorder %s118, %s132
      %p134 = scmp.eq.s32.totalorder %s24, 0
      %p135 = por %p133, %p134
      %s136 = ssub.s32 %s18, %s25
      %p137 = scmp.eq.s32.totalorder %s136, 0
      %s139 = sadd.s32 %s138, 1
      %s140 = scalar_select %p137, %s138, %s139
      %p143 = pneg %p137
      %p144 = scmp.eq.s32.totalorder %s18, 1
      %p145 = por %p143, %p144
      %p146 = scmp.ne.s32.totalorder %s138, %s141
      %p147 = scmp.eq.s32.totalorder %s18, 0
      %p148 = por %p146, %p147
      %p149 = scmp.ne.s32.totalorder %s138, %s141
      %p150 = scmp.eq.s32.totalorder %s23, 1
      %p151 = por %p149, %p150
      %p152 = scmp.ne.s32.totalorder %s141, %s142
      %p153 = scmp.eq.s32.totalorder %s23, 0
      %p154 = por %p152, %p153
      %p155 = scmp.ne.s32.totalorder %s141, %s142
      %p156 = scmp.eq.s32.totalorder %s24, 1
      %p157 = por %p155, %p156
      %p159 = scmp.ne.s32.totalorder %s142, %s158
      %p160 = scmp.eq.s32.totalorder %s24, 0
      %p161 = por %p159, %p160
      %p162 = scmp.le.s32.totalorder 1, %s18
      %p163 = scmp.lt.s32.totalorder %s18, 3
      %p164 = pnand %p162, %p163
      %p165 = pneg %p164
      // Predicated region
      $region9: #{tpu_custom_call.1} parent=5 // pred_check
        _
      $region10: #{tpu_custom_call.1} parent=5 // pred_check_branch
        %167 = sbr.rel (%p164) target = $region12
      $region11: #{tpu_custom_call.1} parent=5 // pred_region
        %s168 = ssub.s32 %s18, 1
        // Predicated region
        $region13: #{tpu_custom_call.1} parent=11 // pred_check
          %p169 = pneg %p65
        $region14: #{tpu_custom_call.1} parent=11 // pred_check_branch
          %171 = sbr.rel (%p169) target = $region16
        $region15: #{tpu_custom_call.1} parent=11 // pred_region
          %s173 = ssub.s32 8192, 8192
          %174 = vsyncadd [#allocation6], %s173
          %s175 = sshll.u32 [#allocation5], 4
          %s176 = int_to_ptr.vmem [resolvable:$true] %s175
          %181 = dma.hbm_to_vmem [thread:$0]  %s1, 8192, %s176, [#allocation6], 256, 256, 16
        $region16: #{tpu_custom_call.1} parent=11 // pred_fallthru
          _
        // Predicated region
        $region17: #{tpu_custom_call.1} parent=11 // pred_check
          %p182 = pneg %p86
        $region18: #{tpu_custom_call.1} parent=11 // pred_check_branch
          %184 = sbr.rel (%p182) target = $region20
        $region19: #{tpu_custom_call.1} parent=11 // pred_region
          _
        $region20: #{tpu_custom_call.1} parent=11 // pred_fallthru
          _
        // Predicated region
        $region21: #{tpu_custom_call.1} parent=11 // pred_check
          %p185 = pneg %p107
        $region22: #{tpu_custom_call.1} parent=11 // pred_check_branch
          %187 = sbr.rel (%p185) target = $region24
        $region23: #{tpu_custom_call.1} parent=11 // pred_region
          %s189 = ssub.s32 4096, 4096
          %190 = vsyncadd [#allocation6], %s189
          %s191 = sshll.u32 [#allocation7], 4
          %s192 = int_to_ptr.vmem [resolvable:$true] %s191
          %197 = dma.hbm_to_vmem [thread:$0]  %s3, 4096, %s192, [#allocation6], 128, 128, 8
        $region24: #{tpu_custom_call.1} parent=11 // pred_fallthru
          _
        // Predicated region
        $region25: #{tpu_custom_call.1} parent=11 // pred_check
          %p198 = pneg %p128
        $region26: #{tpu_custom_call.1} parent=11 // pred_check_branch
          %200 = sbr.rel (%p198) target = $region28
        $region27: #{tpu_custom_call.1} parent=11 // pred_region
          _
        $region28: #{tpu_custom_call.1} parent=11 // pred_fallthru
          _
      $region12: #{tpu_custom_call.1} parent=5 // pred_fallthru
        _
      %p201 = scmp.lt.s32.totalorder %s18, 2
      // Predicated region
      $region29: #{tpu_custom_call.1} parent=5 // pred_check
        %p202 = pneg %p201
      $region30: #{tpu_custom_call.1} parent=5 // pred_check_branch
        %204 = sbr.rel (%p202) target = $region32
      $region31: #{tpu_custom_call.1} parent=5 // pred_region
        // Predicated region
        $region33: #{tpu_custom_call.1} parent=31 // pred_check
          %p205 = pneg %p38
        $region34: #{tpu_custom_call.1} parent=31 // pred_check_branch
          %207 = sbr.rel (%p205) target = $region36
        $region35: #{tpu_custom_call.1} parent=31 // pred_region
          %s208 = sand.u32 %s28, 1
          %s209 = scalar_lea.sflag [#allocation3], %s208
          %s210 = sand.u32 %s28, 1
          %s211 = smul.addr %s210, 272
          %s212 = scalar_lea.vmem [#allocation2], %s211
          %s213 = smul.u32 17, %s18
          %s215 = ssub.s32 4352, 4352
          %216 = vsyncadd %s209, %s215
          %s217 = smul.addr %s213, 2
          %s218 = smul.addr %s217, 128
          %s219 = scalar_lea.hbm %s0, %s218
          %s220 = sshll.u32 %s212, 4
          %s221 = int_to_ptr.vmem [resolvable:$true] %s220
          %226 = dma.hbm_to_vmem [thread:$0]  %s219, 4352, %s221, %s209, 256, 256, 16
        $region36: #{tpu_custom_call.1} parent=31 // pred_fallthru
          _
      $region32: #{tpu_custom_call.1} parent=5 // pred_fallthru
        _
      %p227 = scmp.le.s32.totalorder 1, %s18
      %p228 = scmp.lt.s32.totalorder %s18, 3
      %p229 = pnand %p227, %p228
      %p230 = pneg %p229
      // Predicated region
      $region37: #{tpu_custom_call.1} parent=5 // pred_check
        _
      $region38: #{tpu_custom_call.1} parent=5 // pred_check_branch
        %232 = sbr.rel (%p229) target = $region40
      $region39: #{tpu_custom_call.1} parent=5 // pred_region
        %s233 = ssub.s32 %s18, 1
        %s234 = sand.u32 %s31, 1
        %s235 = scalar_lea.sflag [#allocation3], %s234
        %s236 = sand.u32 %s31, 1
        %s237 = smul.addr %s236, 272
        %s238 = scalar_lea.vmem [#allocation2], %s237
        // Predicated region
        $region41: #{tpu_custom_call.1} parent=39 // pred_check
          %p239 = pneg %p44
        $region42: #{tpu_custom_call.1} parent=39 // pred_check_branch
          %241 = sbr.rel (%p239) target = $region44
        $region43: #{tpu_custom_call.1} parent=39 // pred_region
          %242 = dma.done %s235, 4352
        $region44: #{tpu_custom_call.1} parent=39 // pred_fallthru
          _
        // Predicated region
        $region45: #{tpu_custom_call.1} parent=39 // pred_check
          %p243 = pneg %p65
        $region46: #{tpu_custom_call.1} parent=39 // pred_check_branch
          %245 = sbr.rel (%p243) target = $region48
        $region47: #{tpu_custom_call.1} parent=39 // pred_region
          %246 = dma.done [#allocation6], 8192
        $region48: #{tpu_custom_call.1} parent=39 // pred_fallthru
          _
        // Predicated region
        $region49: #{tpu_custom_call.1} parent=39 // pred_check
          %p247 = pneg %p107
        $region50: #{tpu_custom_call.1} parent=39 // pred_check_branch
          %249 = sbr.rel (%p247) target = $region52
        $region51: #{tpu_custom_call.1} parent=39 // pred_region
          %250 = dma.done [#allocation6], 4096
        $region52: #{tpu_custom_call.1} parent=39 // pred_fallthru
          _
        %s251 = sand.u32 %s31, 1
        %s252 = scalar_lea.sflag [#allocation3], %s251
        %s253 = sand.u32 %s31, 1
        %s254 = smul.addr %s253, 272
        %s255 = scalar_lea.vmem [#allocation2], %s254
        %p256 = pneg %p44
        %p257 = pneg %p41
        %p258 = pneg %p65
        %p259 = pneg %p62
        %p260 = pneg %p86
        %p261 = pneg %p83
        %p262 = pneg %p107
        %p263 = pneg %p104
        %p264 = pneg %p128
        %p265 = pneg %p125
        %p266 = pneg %p154
        %p267 = pneg %p151
        %s268 = sand.u32 %s141, 1
        %s269 = scalar_lea.sflag [#allocation4], %s268
        %s270 = sand.u32 %s141, 1
        %s271 = smul.addr %s270, 136
        %s272 = scalar_lea.vmem [#allocation8], %s271
        %s273 = smul.u32 17, %s23
        %s274 = smul.u32 17, %s23
        %v275 = vld [vmem:[%s238] sm:$0xff]
        %v276 = vld [vmem:[%s238 + $0x8] sm:$0xff]
        %v277 = vld [vmem:[%s238 + $0x10] sm:$0xff]
        %v278 = vld [vmem:[%s238 + $0x18] sm:$0xff]
        %v279 = vld [vmem:[%s238 + $0x20] sm:$0xff]
        %v280 = vld [vmem:[%s238 + $0x28] sm:$0xff]
        %v281 = vld [vmem:[%s238 + $0x30] sm:$0xff]
        %v282 = vld [vmem:[%s238 + $0x38] sm:$0xff]
        %v283 = vld [vmem:[%s238 + $0x40] sm:$0xff]
        %v284 = vld [vmem:[%s238 + $0x48] sm:$0xff]
        %v285 = vld [vmem:[%s238 + $0x50] sm:$0xff]
        %v286 = vld [vmem:[%s238 + $0x58] sm:$0xff]
        %v287 = vld [vmem:[%s238 + $0x60] sm:$0xff]
        %v288 = vld [vmem:[%s238 + $0x68] sm:$0xff]
        %v289 = vld [vmem:[%s238 + $0x70] sm:$0xff]
        %v290 = vld [vmem:[%s238 + $0x78] sm:$0xff]
        %v291 = vld [vmem:[%s238 + $0x80] sm:$0xff]
        %v292 = vld [vmem:[%s238 + $0x88] sm:$0xff]
        %v293 = vld [vmem:[%s238 + $0x90] sm:$0xff]
        %v294 = vld [vmem:[%s238 + $0x98] sm:$0xff]
        %v295 = vld [vmem:[%s238 + $0xa0] sm:$0xff]
        %v296 = vld [vmem:[%s238 + $0xa8] sm:$0xff]
        %v297 = vld [vmem:[%s238 + $0xb0] sm:$0xff]
        %v298 = vld [vmem:[%s238 + $0xb8] sm:$0xff]
        %v299 = vld [vmem:[%s238 + $0xc0] sm:$0xff]
        %v300 = vld [vmem:[%s238 + $0xc8] sm:$0xff]
        %v301 = vld [vmem:[%s238 + $0xd0] sm:$0xff]
        %v302 = vld [vmem:[%s238 + $0xd8] sm:$0xff]
        %v303 = vld [vmem:[%s238 + $0xe0] sm:$0xff]
        %v304 = vld [vmem:[%s238 + $0xe8] sm:$0xff]
        %v305 = vld [vmem:[%s238 + $0xf0] sm:$0xff]
        %v306 = vld [vmem:[%s238 + $0xf8] sm:$0xff]
        %v307 = vld [vmem:[%s238 + $0x100] sm:$0xff]
        %v308 = vld [vmem:[%s238 + $0x108] sm:$0xff]
        %v309 = vld [vmem:[#allocation5] sm:$0xff]
        %v310 = vld [vmem:[#allocation5 + $0x8] sm:$0xff]
        %v311 = vld [vmem:[#allocation5 + $0x10] sm:$0xff]
        %v312 = vld [vmem:[#allocation5 + $0x18] sm:$0xff]
        %v313 = vld [vmem:[#allocation5 + $0x20] sm:$0xff]
        %v314 = vld [vmem:[#allocation5 + $0x28] sm:$0xff]
        %v315 = vld [vmem:[#allocation5 + $0x30] sm:$0xff]
        %v316 = vld [vmem:[#allocation5 + $0x38] sm:$0xff]
        %v317 = vld [vmem:[#allocation5 + $0x40] sm:$0xff]
        %v318 = vld [vmem:[#allocation5 + $0x48] sm:$0xff]
        %v319 = vld [vmem:[#allocation5 + $0x50] sm:$0xff]
        %v320 = vld [vmem:[#allocation5 + $0x58] sm:$0xff]
        %v321 = vld [vmem:[#allocation5 + $0x60] sm:$0xff]
        %v322 = vld [vmem:[#allocation5 + $0x68] sm:$0xff]
        %v323 = vld [vmem:[#allocation5 + $0x70] sm:$0xff]
        %v324 = vld [vmem:[#allocation5 + $0x78] sm:$0xff]
        %v325 = vld [vmem:[#allocation5 + $0x80] sm:$0xff]
        %v326 = vld [vmem:[#allocation5 + $0x88] sm:$0xff]
        %v327 = vld [vmem:[#allocation5 + $0x90] sm:$0xff]
        %v328 = vld [vmem:[#allocation5 + $0x98] sm:$0xff]
        %v329 = vld [vmem:[#allocation5 + $0xa0] sm:$0xff]
        %v330 = vld [vmem:[#allocation5 + $0xa8] sm:$0xff]
        %v331 = vld [vmem:[#allocation5 + $0xb0] sm:$0xff]
        %v332 = vld [vmem:[#allocation5 + $0xb8] sm:$0xff]
        %v333 = vld [vmem:[#allocation5 + $0xc0] sm:$0xff]
        %v334 = vld [vmem:[#allocation5 + $0xc8] sm:$0xff]
        %v335 = vld [vmem:[#allocation5 + $0xd0] sm:$0xff]
        %v336 = vld [vmem:[#allocation5 + $0xd8] sm:$0xff]
        %v337 = vld [vmem:[#allocation5 + $0xe0] sm:$0xff]
        %v338 = vld [vmem:[#allocation5 + $0xe8] sm:$0xff]
        %v339 = vld [vmem:[#allocation5 + $0xf0] sm:$0xff]
        %v340 = vld [vmem:[#allocation5 + $0xf8] sm:$0xff]
        %v341 = vld [vmem:[#allocation5 + $0x100] sm:$0xff]
        %v342 = vld [vmem:[#allocation5 + $0x108] sm:$0xff]
        %v343 = vld [vmem:[#allocation5 + $0x110] sm:$0xff]
        %v344 = vld [vmem:[#allocation5 + $0x118] sm:$0xff]
        %v345 = vld [vmem:[#allocation5 + $0x120] sm:$0xff]
        %v346 = vld [vmem:[#allocation5 + $0x128] sm:$0xff]
        %v347 = vld [vmem:[#allocation5 + $0x130] sm:$0xff]
        %v348 = vld [vmem:[#allocation5 + $0x138] sm:$0xff]
        %v349 = vld [vmem:[#allocation5 + $0x140] sm:$0xff]
        %v350 = vld [vmem:[#allocation5 + $0x148] sm:$0xff]
        %v351 = vld [vmem:[#allocation5 + $0x150] sm:$0xff]
        %v352 = vld [vmem:[#allocation5 + $0x158] sm:$0xff]
        %v353 = vld [vmem:[#allocation5 + $0x160] sm:$0xff]
        %v354 = vld [vmem:[#allocation5 + $0x168] sm:$0xff]
        %v355 = vld [vmem:[#allocation5 + $0x170] sm:$0xff]
        %v356 = vld [vmem:[#allocation5 + $0x178] sm:$0xff]
        %v357 = vld [vmem:[#allocation5 + $0x180] sm:$0xff]
        %v358 = vld [vmem:[#allocation5 + $0x188] sm:$0xff]
        %v359 = vld [vmem:[#allocation5 + $0x190] sm:$0xff]
        %v360 = vld [vmem:[#allocation5 + $0x198] sm:$0xff]
        %v361 = vld [vmem:[#allocation5 + $0x1a0] sm:$0xff]
        %v362 = vld [vmem:[#allocation5 + $0x1a8] sm:$0xff]
        %v363 = vld [vmem:[#allocation5 + $0x1b0] sm:$0xff]
        %v364 = vld [vmem:[#allocation5 + $0x1b8] sm:$0xff]
        %v365 = vld [vmem:[#allocation5 + $0x1c0] sm:$0xff]
        %v366 = vld [vmem:[#allocation5 + $0x1c8] sm:$0xff]
        %v367 = vld [vmem:[#allocation5 + $0x1d0] sm:$0xff]
        %v368 = vld [vmem:[#allocation5 + $0x1d8] sm:$0xff]
        %v369 = vld [vmem:[#allocation5 + $0x1e0] sm:$0xff]
        %v370 = vld [vmem:[#allocation5 + $0x1e8] sm:$0xff]
        %v371 = vld [vmem:[#allocation5 + $0x1f0] sm:$0xff]
        %v372 = vld [vmem:[#allocation5 + $0x1f8] sm:$0xff]
        %v373 = vld [vmem:[%s2] sm:$0x3]
        %v375 = vlaneseq
        %v376 = vshrl.u32 %v375, 7
        %v377 = vsub.s32 0, %v376
        %v378 = vrot.slane %v373, %v377
        %v379 = vlaneseq
        %v380 = vshrl.u32 %v379, 7
        %v381 = vsub.s32 1, %v380
        %v382 = vrot.slane %v373, %v381
        %385 = vmatprep.subr.mxu0 %v340
        %386 = vmatpush1.msra.mxu0 %v339
        %387 = vmatprep.subr.mxu0 %v338
        %388 = vmatpush1.msra.mxu0 %v337
        %389 = vmatprep.subr.mxu0 %v336
        %390 = vmatpush1.msra.mxu0 %v335
        %391 = vmatprep.subr.mxu0 %v334
        %392 = vmatpush1.msra.mxu0 %v333
        %393 = vmatprep.subr.mxu0 %v332
        %394 = vmatpush1.msra.mxu0 %v331
        %395 = vmatprep.subr.mxu0 %v330
        %396 = vmatpush1.msra.mxu0 %v329
        %397 = vmatprep.subr.mxu0 %v328
        %398 = vmatpush1.msra.mxu0 %v327
        %399 = vmatprep.subr.mxu0 %v326
        %400 = vmatpush1.msra.mxu0 %v325
        %401 = vmatprep.subr.mxu0 %v324
        %402 = vmatpush1.msra.mxu0 %v323
        %403 = vmatprep.subr.mxu0 %v322
        %404 = vmatpush1.msra.mxu0 %v321
        %405 = vmatprep.subr.mxu0 %v320
        %406 = vmatpush1.msra.mxu0 %v319
        %407 = vmatprep.subr.mxu0 %v318
        %408 = vmatpush1.msra.mxu0 %v317
        %409 = vmatprep.subr.mxu0 %v316
        %410 = vmatpush1.msra.mxu0 %v315
        %411 = vmatprep.subr.mxu0 %v314
        %412 = vmatpush1.msra.mxu0 %v313
        %413 = vmatprep.subr.mxu0 %v312
        %414 = vmatpush1.msra.mxu0 %v311
        %415 = vmatprep.subr.mxu0 %v310
        %416 = vmatpush1.msra.mxu0 %v309
        %417 = vmatprep.subr.mxu0 %v372
        %418 = vmatpush2.msra.mxu0 %v371
        %419 = vmatprep.subr.mxu0 %v370
        %420 = vmatpush2.msra.mxu0 %v369
        %421 = vmatprep.subr.mxu0 %v368
        %422 = vmatpush2.msra.mxu0 %v367
        %423 = vmatprep.subr.mxu0 %v366
        %424 = vmatpush2.msra.mxu0 %v365
        %425 = vmatprep.subr.mxu0 %v364
        %426 = vmatpush2.msra.mxu0 %v363
        %427 = vmatprep.subr.mxu0 %v362
        %428 = vmatpush2.msra.mxu0 %v361
        %429 = vmatprep.subr.mxu0 %v360
        %430 = vmatpush2.msra.mxu0 %v359
        %431 = vmatprep.subr.mxu0 %v358
        %432 = vmatpush2.msra.mxu0 %v357
        %433 = vmatprep.subr.mxu0 %v356
        %434 = vmatpush2.msra.mxu0 %v355
        %435 = vmatprep.subr.mxu0 %v354
        %436 = vmatpush2.msra.mxu0 %v353
        %437 = vmatprep.subr.mxu0 %v352
        %438 = vmatpush2.msra.mxu0 %v351
        %439 = vmatprep.subr.mxu0 %v350
        %440 = vmatpush2.msra.mxu0 %v349
        %441 = vmatprep.subr.mxu0 %v348
        %442 = vmatpush2.msra.mxu0 %v347
        %443 = vmatprep.subr.mxu0 %v346
        %444 = vmatpush2.msra.mxu0 %v345
        %445 = vmatprep.subr.mxu0 %v344
        %446 = vmatpush2.msra.mxu0 %v343
        %447 = vmatprep.subr.mxu0 %v342
        %448 = vmatpush2.msra.mxu0 %v341
        %449 = vmatprep.mubr.f32.mxu0 %v276
        %450 = vmatmul.mubr.f32.gmra.mxu0 %v275
        %v451 = vpop.f32.mrf.mxu0
        %v452 = vadd.f32 %v378, %v451
        %v453 = vpop.f32.mrf.mxu0
        %v454 = vadd.f32 %v382, %v453
        %455 = vmatprep.mubr.f32.mxu0 %v278
        %456 = vmatmul.mubr.f32.gmra.mxu0 %v277
        %v457 = vpop.f32.mrf.mxu0
        %v458 = vadd.f32 %v378, %v457
        %v459 = vpop.f32.mrf.mxu0
        %v460 = vadd.f32 %v382, %v459
        %461 = vmatprep.mubr.f32.mxu0 %v280
        %462 = vmatmul.mubr.f32.gmra.mxu0 %v279
        %v463 = vpop.f32.mrf.mxu0
        %v464 = vadd.f32 %v378, %v463
        %v465 = vpop.f32.mrf.mxu0
        %v466 = vadd.f32 %v382, %v465
        %467 = vmatprep.mubr.f32.mxu0 %v282
        %468 = vmatmul.mubr.f32.gmra.mxu0 %v281
        %v469 = vpop.f32.mrf.mxu0
        %v470 = vadd.f32 %v378, %v469
        %v471 = vpop.f32.mrf.mxu0
        %v472 = vadd.f32 %v382, %v471
        %473 = vmatprep.mubr.f32.mxu0 %v284
        %474 = vmatmul.mubr.f32.gmra.mxu0 %v283
        %v475 = vpop.f32.mrf.mxu0
        %v476 = vadd.f32 %v378, %v475
        %v477 = vpop.f32.mrf.mxu0
        %v478 = vadd.f32 %v382, %v477
        %479 = vmatprep.mubr.f32.mxu0 %v286
        %480 = vmatmul.mubr.f32.gmra.mxu0 %v285
        %v481 = vpop.f32.mrf.mxu0
        %v482 = vadd.f32 %v378, %v481
        %v483 = vpop.f32.mrf.mxu0
        %v484 = vadd.f32 %v382, %v483
        %485 = vmatprep.mubr.f32.mxu0 %v288
        %486 = vmatmul.mubr.f32.gmra.mxu0 %v287
        %v487 = vpop.f32.mrf.mxu0
        %v488 = vadd.f32 %v378, %v487
        %v489 = vpop.f32.mrf.mxu0
        %v490 = vadd.f32 %v382, %v489
        %491 = vmatprep.mubr.f32.mxu0 %v290
        %492 = vmatmul.mubr.f32.gmra.mxu0 %v289
        %v493 = vpop.f32.mrf.mxu0
        %v494 = vadd.f32 %v378, %v493
        %v495 = vpop.f32.mrf.mxu0
        %v496 = vadd.f32 %v382, %v495
        %497 = vmatprep.mubr.f32.mxu0 %v292
        %498 = vmatmul.mubr.f32.gmra.mxu0 %v291
        %v499 = vpop.f32.mrf.mxu0
        %v500 = vadd.f32 %v378, %v499
        %v501 = vpop.f32.mrf.mxu0
        %v502 = vadd.f32 %v382, %v501
        %503 = vmatprep.mubr.f32.mxu0 %v294
        %504 = vmatmul.mubr.f32.gmra.mxu0 %v293
        %v505 = vpop.f32.mrf.mxu0
        %v506 = vadd.f32 %v378, %v505
        %v507 = vpop.f32.mrf.mxu0
        %v508 = vadd.f32 %v382, %v507
        %509 = vmatprep.mubr.f32.mxu0 %v296
        %510 = vmatmul.mubr.f32.gmra.mxu0 %v295
        %v511 = vpop.f32.mrf.mxu0
        %v512 = vadd.f32 %v378, %v511
        %v513 = vpop.f32.mrf.mxu0
        %v514 = vadd.f32 %v382, %v513
        %515 = vmatprep.mubr.f32.mxu0 %v298
        %516 = vmatmul.mubr.f32.gmra.mxu0 %v297
        %v517 = vpop.f32.mrf.mxu0
        %v518 = vadd.f32 %v378, %v517
        %v519 = vpop.f32.mrf.mxu0
        %v520 = vadd.f32 %v382, %v519
        %521 = vmatprep.mubr.f32.mxu0 %v300
        %522 = vmatmul.mubr.f32.gmra.mxu0 %v299
        %v523 = vpop.f32.mrf.mxu0
        %v524 = vadd.f32 %v378, %v523
        %v525 = vpop.f32.mrf.mxu0
        %v526 = vadd.f32 %v382, %v525
        %527 = vmatprep.mubr.f32.mxu0 %v302
        %528 = vmatmul.mubr.f32.gmra.mxu0 %v301
        %v529 = vpop.f32.mrf.mxu0
        %v530 = vadd.f32 %v378, %v529
        %v531 = vpop.f32.mrf.mxu0
        %v532 = vadd.f32 %v382, %v531
        %533 = vmatprep.mubr.f32.mxu0 %v304
        %534 = vmatmul.mubr.f32.gmra.mxu0 %v303
        %v535 = vpop.f32.mrf.mxu0
        %v536 = vadd.f32 %v378, %v535
        %v537 = vpop.f32.mrf.mxu0
        %v538 = vadd.f32 %v382, %v537
        %539 = vmatprep.mubr.f32.mxu0 %v306
        %540 = vmatmul.mubr.f32.gmra.mxu0 %v305
        %v541 = vpop.f32.mrf.mxu0
        %v542 = vadd.f32 %v378, %v541
        %v543 = vpop.f32.mrf.mxu0
        %v544 = vadd.f32 %v382, %v543
        %545 = vmatprep.mubr.f32.mxu0 %v308
        %546 = vmatmul.mubr.f32.gmra.mxu0 %v307
        %v547 = vpop.f32.mrf.mxu0
        %v548 = vadd.f32 %v378, %v547
        %v549 = vpop.f32.mrf.mxu0
        %v550 = vadd.f32 %v382, %v549
        %551 = vdwg.mxu0
        %v552 = vtanh.pop %v452
        %v553 = vtanh.pop %v454
        %v554 = vtanh.pop %v458
        %v555 = vtanh.pop %v460
        %v556 = vtanh.pop %v464
        %v557 = vtanh.pop %v466
        %v558 = vtanh.pop %v470
        %v559 = vtanh.pop %v472
        %v560 = vtanh.pop %v476
        %v561 = vtanh.pop %v478
        %v562 = vtanh.pop %v482
        %v563 = vtanh.pop %v484
        %v564 = vtanh.pop %v488
        %v565 = vtanh.pop %v490
        %v566 = vtanh.pop %v494
        %v567 = vtanh.pop %v496
        %v568 = vtanh.pop %v500
        %v569 = vtanh.pop %v502
        %v570 = vtanh.pop %v506
        %v571 = vtanh.pop %v508
        %v572 = vtanh.pop %v512
        %v573 = vtanh.pop %v514
        %v574 = vtanh.pop %v518
        %v575 = vtanh.pop %v520
        %v576 = vtanh.pop %v524
        %v577 = vtanh.pop %v526
        %v578 = vtanh.pop %v530
        %v579 = vtanh.pop %v532
        %v580 = vtanh.pop %v536
        %v581 = vtanh.pop %v538
        %v582 = vtanh.pop %v542
        %v583 = vtanh.pop %v544
        %v584 = vtanh.pop %v548
        %v585 = vtanh.pop %v550
        %v586 = vld [vmem:[#allocation7] sm:$0xff]
        %v587 = vld [vmem:[#allocation7 + $0x8] sm:$0xff]
        %v588 = vld [vmem:[#allocation7 + $0x10] sm:$0xff]
        %v589 = vld [vmem:[#allocation7 + $0x18] sm:$0xff]
        %v590 = vld [vmem:[#allocation7 + $0x20] sm:$0xff]
        %v591 = vld [vmem:[#allocation7 + $0x28] sm:$0xff]
        %v592 = vld [vmem:[#allocation7 + $0x30] sm:$0xff]
        %v593 = vld [vmem:[#allocation7 + $0x38] sm:$0xff]
        %v594 = vld [vmem:[#allocation7 + $0x40] sm:$0xff]
        %v595 = vld [vmem:[#allocation7 + $0x48] sm:$0xff]
        %v596 = vld [vmem:[#allocation7 + $0x50] sm:$0xff]
        %v597 = vld [vmem:[#allocation7 + $0x58] sm:$0xff]
        %v598 = vld [vmem:[#allocation7 + $0x60] sm:$0xff]
        %v599 = vld [vmem:[#allocation7 + $0x68] sm:$0xff]
        %v600 = vld [vmem:[#allocation7 + $0x70] sm:$0xff]
        %v601 = vld [vmem:[#allocation7 + $0x78] sm:$0xff]
        %v602 = vld [vmem:[#allocation7 + $0x80] sm:$0xff]
        %v603 = vld [vmem:[#allocation7 + $0x88] sm:$0xff]
        %v604 = vld [vmem:[#allocation7 + $0x90] sm:$0xff]
        %v605 = vld [vmem:[#allocation7 + $0x98] sm:$0xff]
        %v606 = vld [vmem:[#allocation7 + $0xa0] sm:$0xff]
        %v607 = vld [vmem:[#allocation7 + $0xa8] sm:$0xff]
        %v608 = vld [vmem:[#allocation7 + $0xb0] sm:$0xff]
        %v609 = vld [vmem:[#allocation7 + $0xb8] sm:$0xff]
        %v610 = vld [vmem:[#allocation7 + $0xc0] sm:$0xff]
        %v611 = vld [vmem:[#allocation7 + $0xc8] sm:$0xff]
        %v612 = vld [vmem:[#allocation7 + $0xd0] sm:$0xff]
        %v613 = vld [vmem:[#allocation7 + $0xd8] sm:$0xff]
        %v614 = vld [vmem:[#allocation7 + $0xe0] sm:$0xff]
        %v615 = vld [vmem:[#allocation7 + $0xe8] sm:$0xff]
        %v616 = vld [vmem:[#allocation7 + $0xf0] sm:$0xff]
        %v617 = vld [vmem:[#allocation7 + $0xf8] sm:$0xff]
        %v618 = vld [vmem:[%s4] sm:$0x1]
        %v620 = vlaneseq
        %v621 = vshrl.u32 %v620, 7
        %v622 = vsub.s32 0, %v621
        %v623 = vrot.slane %v618, %v622
        %625 = vmatprep.subr.mxu0 0.0
        %626 = vmatpush1.msra.mxu0 %v601
        %627 = vmatprep.subr.mxu0 0.0
        %628 = vmatpush1.msra.mxu0 %v600
        %629 = vmatprep.subr.mxu0 0.0
        %630 = vmatpush1.msra.mxu0 %v599
        %631 = vmatprep.subr.mxu0 0.0
        %632 = vmatpush1.msra.mxu0 %v598
        %633 = vmatprep.subr.mxu0 0.0
        %634 = vmatpush1.msra.mxu0 %v597
        %635 = vmatprep.subr.mxu0 0.0
        %636 = vmatpush1.msra.mxu0 %v596
        %637 = vmatprep.subr.mxu0 0.0
        %638 = vmatpush1.msra.mxu0 %v595
        %639 = vmatprep.subr.mxu0 0.0
        %640 = vmatpush1.msra.mxu0 %v594
        %641 = vmatprep.subr.mxu0 0.0
        %642 = vmatpush1.msra.mxu0 %v593
        %643 = vmatprep.subr.mxu0 0.0
        %644 = vmatpush1.msra.mxu0 %v592
        %645 = vmatprep.subr.mxu0 0.0
        %646 = vmatpush1.msra.mxu0 %v591
        %647 = vmatprep.subr.mxu0 0.0
        %648 = vmatpush1.msra.mxu0 %v590
        %649 = vmatprep.subr.mxu0 0.0
        %650 = vmatpush1.msra.mxu0 %v589
        %651 = vmatprep.subr.mxu0 0.0
        %652 = vmatpush1.msra.mxu0 %v588
        %653 = vmatprep.subr.mxu0 0.0
        %654 = vmatpush1.msra.mxu0 %v587
        %655 = vmatprep.subr.mxu0 0.0
        %656 = vmatpush1.msra.mxu0 %v586
        %657 = vmatprep.subr.mxu0 0.0
        %658 = vmatpush2.msra.mxu0 %v617
        %659 = vmatprep.subr.mxu0 0.0
        %660 = vmatpush2.msra.mxu0 %v616
        %661 = vmatprep.subr.mxu0 0.0
        %662 = vmatpush2.msra.mxu0 %v615
        %663 = vmatprep.subr.mxu0 0.0
        %664 = vmatpush2.msra.mxu0 %v614
        %665 = vmatprep.subr.mxu0 0.0
        %666 = vmatpush2.msra.mxu0 %v613
        %667 = vmatprep.subr.mxu0 0.0
        %668 = vmatpush2.msra.mxu0 %v612
        %669 = vmatprep.subr.mxu0 0.0
        %670 = vmatpush2.msra.mxu0 %v611
        %671 = vmatprep.subr.mxu0 0.0
        %672 = vmatpush2.msra.mxu0 %v610
        %673 = vmatprep.subr.mxu0 0.0
        %674 = vmatpush2.msra.mxu0 %v609
        %675 = vmatprep.subr.mxu0 0.0
        %676 = vmatpush2.msra.mxu0 %v608
        %677 = vmatprep.subr.mxu0 0.0
        %678 = vmatpush2.msra.mxu0 %v607
        %679 = vmatprep.subr.mxu0 0.0
        %680 = vmatpush2.msra.mxu0 %v606
        %681 = vmatprep.subr.mxu0 0.0
        %682 = vmatpush2.msra.mxu0 %v605
        %683 = vmatprep.subr.mxu0 0.0
        %684 = vmatpush2.msra.mxu0 %v604
        %685 = vmatprep.subr.mxu0 0.0
        %686 = vmatpush2.msra.mxu0 %v603
        %687 = vmatprep.subr.mxu0 0.0
        %688 = vmatpush2.msra.mxu0 %v602
        %689 = vmatprep.mubr.f32.mxu0 %v553
        %690 = vmatmul.mubr.f32.gmra.mxu0 %v552
        %v691 = vpop.f32.mrf.mxu0
        %v692 = vadd.f32 %v623, %v691
        %v693 = vpop.f32.mrf.mxu0
        %694 = vmatprep.mubr.f32.mxu0 %v555
        %695 = vmatmul.mubr.f32.gmra.mxu0 %v554
        %v696 = vpop.f32.mrf.mxu0
        %v697 = vadd.f32 %v623, %v696
        %v698 = vpop.f32.mrf.mxu0
        %699 = vmatprep.mubr.f32.mxu0 %v557
        %700 = vmatmul.mubr.f32.gmra.mxu0 %v556
        %v701 = vpop.f32.mrf.mxu0
        %v702 = vadd.f32 %v623, %v701
        %v703 = vpop.f32.mrf.mxu0
        %704 = vmatprep.mubr.f32.mxu0 %v559
        %705 = vmatmul.mubr.f32.gmra.mxu0 %v558
        %v706 = vpop.f32.mrf.mxu0
        %v707 = vadd.f32 %v623, %v706
        %v708 = vpop.f32.mrf.mxu0
        %709 = vmatprep.mubr.f32.mxu0 %v561
        %710 = vmatmul.mubr.f32.gmra.mxu0 %v560
        %v711 = vpop.f32.mrf.mxu0
        %v712 = vadd.f32 %v623, %v711
        %v713 = vpop.f32.mrf.mxu0
        %714 = vmatprep.mubr.f32.mxu0 %v563
        %715 = vmatmul.mubr.f32.gmra.mxu0 %v562
        %v716 = vpop.f32.mrf.mxu0
        %v717 = vadd.f32 %v623, %v716
        %v718 = vpop.f32.mrf.mxu0
        %719 = vmatprep.mubr.f32.mxu0 %v565
        %720 = vmatmul.mubr.f32.gmra.mxu0 %v564
        %v721 = vpop.f32.mrf.mxu0
        %v722 = vadd.f32 %v623, %v721
        %v723 = vpop.f32.mrf.mxu0
        %724 = vmatprep.mubr.f32.mxu0 %v567
        %725 = vmatmul.mubr.f32.gmra.mxu0 %v566
        %v726 = vpop.f32.mrf.mxu0
        %v727 = vadd.f32 %v623, %v726
        %v728 = vpop.f32.mrf.mxu0
        %729 = vmatprep.mubr.f32.mxu0 %v569
        %730 = vmatmul.mubr.f32.gmra.mxu0 %v568
        %v731 = vpop.f32.mrf.mxu0
        %v732 = vadd.f32 %v623, %v731
        %v733 = vpop.f32.mrf.mxu0
        %734 = vmatprep.mubr.f32.mxu0 %v571
        %735 = vmatmul.mubr.f32.gmra.mxu0 %v570
        %v736 = vpop.f32.mrf.mxu0
        %v737 = vadd.f32 %v623, %v736
        %v738 = vpop.f32.mrf.mxu0
        %739 = vmatprep.mubr.f32.mxu0 %v573
        %740 = vmatmul.mubr.f32.gmra.mxu0 %v572
        %v741 = vpop.f32.mrf.mxu0
        %v742 = vadd.f32 %v623, %v741
        %v743 = vpop.f32.mrf.mxu0
        %744 = vmatprep.mubr.f32.mxu0 %v575
        %745 = vmatmul.mubr.f32.gmra.mxu0 %v574
        %v746 = vpop.f32.mrf.mxu0
        %v747 = vadd.f32 %v623, %v746
        %v748 = vpop.f32.mrf.mxu0
        %749 = vmatprep.mubr.f32.mxu0 %v577
        %750 = vmatmul.mubr.f32.gmra.mxu0 %v576
        %v751 = vpop.f32.mrf.mxu0
        %v752 = vadd.f32 %v623, %v751
        %v753 = vpop.f32.mrf.mxu0
        %754 = vmatprep.mubr.f32.mxu0 %v579
        %755 = vmatmul.mubr.f32.gmra.mxu0 %v578
        %v756 = vpop.f32.mrf.mxu0
        %v757 = vadd.f32 %v623, %v756
        %v758 = vpop.f32.mrf.mxu0
        %759 = vmatprep.mubr.f32.mxu0 %v581
        %760 = vmatmul.mubr.f32.gmra.mxu0 %v580
        %v761 = vpop.f32.mrf.mxu0
        %v762 = vadd.f32 %v623, %v761
        %v763 = vpop.f32.mrf.mxu0
        %764 = vmatprep.mubr.f32.mxu0 %v583
        %765 = vmatmul.mubr.f32.gmra.mxu0 %v582
        %v766 = vpop.f32.mrf.mxu0
        %v767 = vadd.f32 %v623, %v766
        %v768 = vpop.f32.mrf.mxu0
        %769 = vmatprep.mubr.f32.mxu0 %v585
        %770 = vmatmul.mubr.f32.gmra.mxu0 %v584
        %v771 = vpop.f32.mrf.mxu0
        %v772 = vadd.f32 %v623, %v771
        %v773 = vpop.f32.mrf.mxu0
        %774 = vdwg.mxu0
        %775 = vst [vmem:[%s272] sm:$0xff] %v692
        %776 = vst [vmem:[%s272 + $0x8] sm:$0xff] %v697
        %777 = vst [vmem:[%s272 + $0x10] sm:$0xff] %v702
        %778 = vst [vmem:[%s272 + $0x18] sm:$0xff] %v707
        %779 = vst [vmem:[%s272 + $0x20] sm:$0xff] %v712
        %780 = vst [vmem:[%s272 + $0x28] sm:$0xff] %v717
        %781 = vst [vmem:[%s272 + $0x30] sm:$0xff] %v722
        %782 = vst [vmem:[%s272 + $0x38] sm:$0xff] %v727
        %783 = vst [vmem:[%s272 + $0x40] sm:$0xff] %v732
        %784 = vst [vmem:[%s272 + $0x48] sm:$0xff] %v737
        %785 = vst [vmem:[%s272 + $0x50] sm:$0xff] %v742
        %786 = vst [vmem:[%s272 + $0x58] sm:$0xff] %v747
        %787 = vst [vmem:[%s272 + $0x60] sm:$0xff] %v752
        %788 = vst [vmem:[%s272 + $0x68] sm:$0xff] %v757
        %789 = vst [vmem:[%s272 + $0x70] sm:$0xff] %v762
        %790 = vst [vmem:[%s272 + $0x78] sm:$0xff] %v767
        %791 = vst [vmem:[%s272 + $0x80] sm:$0xff] %v772
        %s792 = sand.u32 %s141, 1
        %s793 = scalar_lea.sflag [#allocation4], %s792
        %s794 = sand.u32 %s141, 1
        %s795 = smul.addr %s794, 136
        %s796 = scalar_lea.vmem [#allocation8], %s795
        // Predicated region
        $region53: #{tpu_custom_call.1} parent=39 // pred_check
          %p797 = pneg %p151
        $region54: #{tpu_custom_call.1} parent=39 // pred_check_branch
          %799 = sbr.rel (%p797) target = $region56
        $region55: #{tpu_custom_call.1} parent=39 // pred_region
          %s800 = smul.u32 17, %s23
          %s802 = ssub.s32 2176, 2176
          %803 = vsyncadd %s793, %s802
          %s804 = smul.addr %s800, 128
          %s805 = scalar_lea.hbm %s5, %s804
          %s806 = sshll.u32 %s796, 4
          %s807 = int_to_ptr.vmem [resolvable:$true] %s806
          %812 = dma.vmem_to_hbm [thread:$0]  %s807, 2176, %s805, %s793, 128, 128, 8
        $region56: #{tpu_custom_call.1} parent=39 // pred_fallthru
          _
      $region40: #{tpu_custom_call.1} parent=5 // pred_fallthru
        _
      %p813 = scmp.le.s32.totalorder 2, %s18
      // Predicated region
      $region57: #{tpu_custom_call.1} parent=5 // pred_check
        %p814 = pneg %p813
      $region58: #{tpu_custom_call.1} parent=5 // pred_check_branch
        %816 = sbr.rel (%p814) target = $region60
      $region59: #{tpu_custom_call.1} parent=5 // pred_region
        %s817 = ssub.s32 %s18, 2
        // Predicated region
        $region61: #{tpu_custom_call.1} parent=59 // pred_check
          %p818 = pneg %p157
        $region62: #{tpu_custom_call.1} parent=59 // pred_check_branch
          %820 = sbr.rel (%p818) target = $region64
        $region63: #{tpu_custom_call.1} parent=59 // pred_region
          %s821 = sand.u32 %s142, 1
          %s822 = scalar_lea.sflag [#allocation4], %s821
          %s823 = sand.u32 %s142, 1
          %s824 = smul.addr %s823, 136
          %s825 = scalar_lea.vmem [#allocation8], %s824
          %826 = dma.done %s822, 2176
        $region64: #{tpu_custom_call.1} parent=59 // pred_fallthru
          _
      $region60: #{tpu_custom_call.1} parent=5 // pred_fallthru
        _
    $region6: #{tpu_custom_call.1} parent=1 // loop_footer
      %s22 = sadd.s32 1, %s18
    $region7: #{tpu_custom_call.1} parent=1 // loop_footer_branch
      %17 = sbr.rel target = $region3
    $region8: #{tpu_custom_call.1} parent=1 // loop_exit
      _
    %827 = vsyncpa [#allocation3], 1
    %s828 = scalar_lea.sflag [#allocation3], 1
    %829 = vsyncpa %s828, 1
    %830 = vsyncpa [#allocation6], 1
    %831 = vsyncpa [#allocation4], 1
    %s832 = scalar_lea.sflag [#allocation4], 1
    %833 = vsyncpa %s832, 1

</llo_original>
